<compile_context>
chip_gen: v7x
topology: tpu7x:2x2x1
jax: 0.10.0
libtpu: 0.0.40
codegen_flags: <defaults>
</compile_context>

<pallas_src>
import functools

import numpy as np

import jax
import jax.numpy as jnp
from jax import lax
from jax.experimental import pallas as pl
from jax.experimental.pallas import tpu as pltpu

KERNEL_SIZES = (1, 2, 3, 4)
CHANNELS = (10, 20, 30, 40)
TOTAL_C = sum(CHANNELS)        # 100
LANES = 128                    # lane-dense fused channel dim (>= TOTAL_C)
MAX_K = max(KERNEL_SIZES)      # 4 conv taps / shifts


def _round_up(x, m):
    return (x + m - 1) // m * m


def _char_cnn_kernel(ids_ref, wf_ref, bias_ref, mask_ref, out_ref, *,
                     vsub, shifts_per_seg):
    """Fused one-hot gather + 4-branch char CNN + masked max-pool.

    ids_ref  : (TN, Wi) int32 -- char ids, widened so [:, j:j+Wp] is in-bounds (j < 4)
    wf_ref   : (4*vsub, 128)  -- K-concatenated fused (emb_table @ conv_w[tap]) weights
    bias_ref : (1, 128) f32   -- channel-concatenated conv biases
    mask_ref : (Wp, 128) f32  -- 1.0 where (position, channel) is a valid conv output
    out_ref  : (TN, 128) f32  -- max-pooled features, lane-dense
    """
    tn, lanes = out_ref.shape
    wp = mask_ref.shape[0]
    k_total = wf_ref.shape[0]
    odt = wf_ref.dtype
    seg_w = vsub * shifts_per_seg          # 128-lane aligned segment width
    n_seg = MAX_K // shifts_per_seg

    ids = ids_ref[...]                                            # (TN, Wi) int32
    # Loop-invariant vocab iota, built once (hoisted out of the tap loop).
    iota = lax.broadcasted_iota(jnp.int32, (tn, wp, seg_w), 2)
    segs = []
    for s in range(n_seg):                                        # static unroll
        hot = None
        for h in range(shifts_per_seg):
            j = s * shifts_per_seg + h                            # conv tap / shift
            ids_j = ids[:, j:j + wp][:, :, None]                  # (TN, Wp, 1)
            if h:
                ids_j = ids_j + h * vsub                          # pack tap into upper lanes
            eq = iota == ids_j
            hot = eq if hot is None else (hot | eq)
        segs.append(hot.astype(odt))                              # (TN, Wp, seg_w)
    lhs = segs[0] if n_seg == 1 else jnp.concatenate(segs, axis=-1)
    lhs = lhs.reshape(tn * wp, k_total)                           # free: wp % 8 == 0
    # Single MXU matmul: all 4 taps accumulate along K inside the systolic array.
    z = jnp.dot(lhs, wf_ref[...], preferred_element_type=jnp.float32)
    z = z.reshape(tn, wp, lanes)
    z = jnp.maximum(z + bias_ref[...], 0.0) * mask_ref[...]       # bias + ReLU + validity
    out_ref[...] = jnp.max(z, axis=1).astype(out_ref.dtype)       # max over char positions


def character_embedding_forward(char_ids, emb_table, conv_ws, conv_bs, *,
                                block_n=512, weight_dtype=jnp.bfloat16):
    """char_ids: (B, S, W) int; returns (B, S, 100) float32.

    conv_ws[b]: (k_b, D, C_b)  (torch Conv2d weight[c, d, 0, j] -> w[j, d, c])
    conv_bs[b]: (1, C_b)
    weight_dtype: MXU operand dtype.  bf16 (default) gives 3-4x MXU throughput at
        ~1e-3 relative error; pass jnp.float32 for parity with the f32 PyTorch module.
    """
    # TODO(synk): nn.Dropout is identity at inference; training-mode dropout not modeled.
    b, s, w_len = char_ids.shape
    num_chars, _ = emb_table.shape
    assert w_len >= MAX_K, "word length must be >= largest conv kernel (4)"

    n = b * s
    wp = _round_up(w_len, 8)                 # conv anchor positions per word
    wp_ids = _round_up(wp + MAX_K - 1, 8)    # ids width so in-kernel [:, j:j+wp] stays in-bounds
    # Per-tap vocab segment of the fused K axis.  For vocab <= 64 two taps are packed
    # per 128-lane segment so K = 4*64 = 256 fills the MXU depth and all in-kernel
    # concatenations stay 128-lane aligned.
    if num_chars <= 64:
        vsub, p = 64, 2
    else:
        vsub, p = _round_up(num_chars, 128), 1
    k_total = MAX_K * vsub

    # --- fused per-tap weights (K-concatenated), bias, valid-position mask -------------
    # one_hot(ids) @ table @ W == one_hot(ids) @ (table @ W): the embedding gather is
    # folded into the conv weights, so only int32 ids ever cross HBM per grid step.
    table = emb_table.astype(jnp.float32)
    wf = jnp.zeros((MAX_K, vsub, LANES), jnp.float32)
    bias = jnp.zeros((1, LANES), jnp.float32)
    mask_np = np.zeros((wp, LANES), np.float32)
    off = 0
    for k, c, wgt, bb in zip(KERNEL_SIZES, CHANNELS, conv_ws, conv_bs):
        proj = jnp.einsum('vd,kdc->kvc', table, wgt.astype(jnp.float32))   # (k, V, c)
        wf = wf.at[:k, :num_chars, off:off + c].set(proj)
        bias = bias.at[0, off:off + c].set(bb.reshape(-1).astype(jnp.float32))
        mask_np[: w_len - k + 1, off:off + c] = 1.0    # valid conv output positions
        off += c
    wf_flat = wf.reshape(k_total, LANES).astype(weight_dtype)   # row = tap*vsub + char_id
    mask = jnp.asarray(mask_np)

    # --- ids: ONE (n_pad, wp_ids) int32 stream (no 4x shift replication in HBM) --------
    ids = char_ids.reshape(n, w_len).astype(jnp.int32)
    ids = jnp.pad(ids, ((0, 0), (0, wp_ids - w_len)))   # pad with char id 0 (masked anyway)

    # block_n: multiple of 8; prefer >= 2 grid steps so both v7x TensorCores get work.
    block_n = _round_up(
        max(8, min(int(block_n), _round_up(max(1, (n + 1) // 2), 8))), 8)
    n_pad = _round_up(n, block_n)
    if n_pad != n:
        ids = jnp.pad(ids, ((0, n_pad - n), (0, 0)))

    # Explicit VMEM budget: double-buffered IO blocks + in-kernel intermediates.
    itemsize = jnp.dtype(weight_dtype).itemsize
    io_bytes = 2 * (block_n * wp_ids * 4 + k_total * LANES * itemsize
                    + (1 + wp) * LANES * 4 + block_n * LANES * 4)
    tmp_bytes = (block_n * wp * vsub * p * 4               # hoisted iota (int32)
                 + 2 * block_n * wp * k_total * itemsize   # one-hot segments + concat copy
                 + 2 * block_n * wp * LANES * 4)           # matmul result + biased/masked copy
    vmem_limit = int(min(max(2 * (io_bytes + tmp_bytes), 32 << 20), 48 << 20))

    kernel = functools.partial(_char_cnn_kernel, vsub=vsub, shifts_per_seg=p)
    out = pl.pallas_call(
        kernel,
        out_shape=jax.ShapeDtypeStruct((n_pad, LANES), jnp.float32),
        grid_spec=pltpu.PrefetchScalarGridSpec(
            num_scalar_prefetch=0,
            grid=(n_pad // block_n,),
            in_specs=[
                pl.BlockSpec((block_n, wp_ids), lambda i: (i, 0)),
                pl.BlockSpec((k_total, LANES), lambda i: (0, 0)),
                pl.BlockSpec((1, LANES), lambda i: (0, 0)),
                pl.BlockSpec((wp, LANES), lambda i: (0, 0)),
            ],
            out_specs=pl.BlockSpec((block_n, LANES), lambda i: (i, 0)),
        ),
        compiler_params=pltpu.CompilerParams(
            dimension_semantics=("parallel",),
            vmem_limit_bytes=vmem_limit),
    )(ids, wf_flat, bias, mask)

    return out[:n, :TOTAL_C].reshape(b, s, TOTAL_C)


def reference_forward(char_ids, emb_table, conv_ws, conv_bs):
    """Pure-JAX reference matching the PyTorch forward (eval mode)."""
    emb = jnp.take(emb_table, char_ids, axis=0)            # (B, S, W, D)
    outs = []
    for k, c, wgt, bias in zip(KERNEL_SIZES, CHANNELS, conv_ws, conv_bs):
        t = emb.shape[2] - k + 1
        acc = jnp.zeros(emb.shape[:2] + (t, c), jnp.float32)
        for j in range(k):
            acc = acc + jnp.einsum('bswd,dc->bswc',
                                   emb[:, :, j:j + t, :], wgt[j])
        acc = jax.nn.relu(acc + bias.reshape(1, 1, 1, c))
        outs.append(jnp.max(acc, axis=2))                   # (B, S, C)
    return jnp.concatenate(outs, axis=-1)                   # (B, S, 100)


if __name__ == "__main__":
    # Small, deterministic setup.
    num_chars = 50
    char_dim = 32      # D
    batch = 2          # B
    seq = 8            # S (words)
    word_len = 16      # W (chars per word), must be >= max kernel size (4)

    key = jax.random.PRNGKey(0)
    k_ids, k_emb, *k_w = jax.random.split(key, 2 + 2 * len(KERNEL_SIZES))

    char_ids = jax.random.randint(
        k_ids, (batch, seq, word_len), minval=0, maxval=num_chars,
        dtype=jnp.int32)

    emb_table = 0.1 * jax.random.normal(
        k_emb, (num_chars, char_dim), dtype=jnp.float32)
    emb_table = emb_table.at[0].set(0.0)   # padding_idx=0

    conv_ws, conv_bs = [], []
    for i, (k, c) in enumerate(zip(KERNEL_SIZES, CHANNELS)):
        conv_ws.append(0.1 * jax.random.normal(
            k_w[2 * i], (k, char_dim, c), dtype=jnp.float32))
        conv_bs.append(0.1 * jax.random.normal(
            k_w[2 * i + 1], (1, c), dtype=jnp.float32))

    ref = reference_forward(char_ids, emb_table, conv_ws, conv_bs)

    # Fast path: bf16 MXU operands (one-hot is exact; fused weights ~1e-3 rel error).
    fwd = jax.jit(functools.partial(character_embedding_forward, block_n=512))
    out = jax.block_until_ready(fwd(char_ids, emb_table, conv_ws, conv_bs))
    assert out.shape == (batch, seq, TOTAL_C), out.shape
    assert jnp.allclose(out, ref, atol=5e-3, rtol=5e-3), \
        float(jnp.max(jnp.abs(out - ref)))

    # Parity path: f32 MXU operands reproduce the f32 PyTorch numerics tightly.
    fwd32 = jax.jit(functools.partial(character_embedding_forward,
                                      weight_dtype=jnp.float32))
    out32 = jax.block_until_ready(fwd32(char_ids, emb_table, conv_ws, conv_bs))
    assert jnp.allclose(out32, ref, atol=1e-5, rtol=1e-5), \
        float(jnp.max(jnp.abs(out32 - ref)))

    print("KERNEL_OK")
</pallas_src>

<mosaic_0001>
module attributes {stable_mosaic.version = 11 : i64} {
  func.func @_char_cnn_kernel(%arg0: i32, %arg1: memref<8x24xi32, #tpu.memory_space<vmem>>, %arg2: memref<256x128xbf16, #tpu.memory_space<vmem>>, %arg3: memref<1x128xf32, #tpu.memory_space<vmem>>, %arg4: memref<16x128xf32, #tpu.memory_space<vmem>>, %arg5: memref<8x128xf32, #tpu.memory_space<vmem>>) attributes {dimension_semantics = [#tpu.dimension_semantics<parallel>], iteration_bounds = array<i64: 2>, scalar_prefetch = 0 : i64, scratch_operands = 0 : i64, tpu.core_type = #tpu.core_type<tc>, window_params = [{transform_indices = @transform_0, window_bounds = array<i64: 8, 24>}, {pipeline_mode = #tpu.pipeline_mode<synchronous>, transform_indices = @transform_1, window_bounds = array<i64: 256, 128>}, {pipeline_mode = #tpu.pipeline_mode<synchronous>, transform_indices = @transform_2, window_bounds = array<i64: 1, 128>}, {pipeline_mode = #tpu.pipeline_mode<synchronous>, transform_indices = @transform_3, window_bounds = array<i64: 16, 128>}, {transform_indices = @transform_4, window_bounds = array<i64: 8, 128>}]} {
    %c0 = arith.constant 0 : index
    %c0_0 = arith.constant 0 : index
    %0 = vector.load %arg1[%c0, %c0_0] : memref<8x24xi32, #tpu.memory_space<vmem>>, vector<8x24xi32>
    %1 = tpu.iota {dimensions = array<i32: 2>} : vector<8x16x128xi32>
    %2 = vector.extract_strided_slice %0 {offsets = [0, 0], sizes = [8, 16], strides = [1, 1]} : vector<8x24xi32> to vector<8x16xi32>
    %3 = vector.shape_cast %2 : vector<8x16xi32> to vector<8x16x1xi32>
    %4 = vector.broadcast %3 : vector<8x16x1xi32> to vector<8x16x128xi32>
    %5 = arith.cmpi eq, %1, %4 : vector<8x16x128xi32>
    %6 = vector.extract_strided_slice %0 {offsets = [0, 1], sizes = [8, 16], strides = [1, 1]} : vector<8x24xi32> to vector<8x16xi32>
    %7 = vector.shape_cast %6 : vector<8x16xi32> to vector<8x16x1xi32>
    %c64_i32 = arith.constant 64 : i32
    %8 = vector.broadcast %c64_i32 : i32 to vector<8x16x1xi32>
    %9 = arith.addi %7, %8 : vector<8x16x1xi32>
    %10 = vector.broadcast %9 : vector<8x16x1xi32> to vector<8x16x128xi32>
    %11 = arith.cmpi eq, %1, %10 : vector<8x16x128xi32>
    %12 = arith.ori %5, %11 : vector<8x16x128xi1>
    %13 = arith.extui %12 : vector<8x16x128xi1> to vector<8x16x128xi32>
    %14 = arith.sitofp %13 : vector<8x16x128xi32> to vector<8x16x128xf32>
    %15 = arith.truncf %14 : vector<8x16x128xf32> to vector<8x16x128xbf16>
    %16 = vector.extract_strided_slice %0 {offsets = [0, 2], sizes = [8, 16], strides = [1, 1]} : vector<8x24xi32> to vector<8x16xi32>
    %17 = vector.shape_cast %16 : vector<8x16xi32> to vector<8x16x1xi32>
    %18 = vector.broadcast %17 : vector<8x16x1xi32> to vector<8x16x128xi32>
    %19 = arith.cmpi eq, %1, %18 : vector<8x16x128xi32>
    %20 = vector.extract_strided_slice %0 {offsets = [0, 3], sizes = [8, 16], strides = [1, 1]} : vector<8x24xi32> to vector<8x16xi32>
    %21 = vector.shape_cast %20 : vector<8x16xi32> to vector<8x16x1xi32>
    %c64_i32_1 = arith.constant 64 : i32
    %22 = vector.broadcast %c64_i32_1 : i32 to vector<8x16x1xi32>
    %23 = arith.addi %21, %22 : vector<8x16x1xi32>
    %24 = vector.broadcast %23 : vector<8x16x1xi32> to vector<8x16x128xi32>
    %25 = arith.cmpi eq, %1, %24 : vector<8x16x128xi32>
    %26 = arith.ori %19, %25 : vector<8x16x128xi1>
    %27 = arith.extui %26 : vector<8x16x128xi1> to vector<8x16x128xi32>
    %28 = arith.sitofp %27 : vector<8x16x128xi32> to vector<8x16x128xf32>
    %29 = arith.truncf %28 : vector<8x16x128xf32> to vector<8x16x128xbf16>
    %30 = tpu.concatenate %15, %29 in 2 : vector<8x16x128xbf16>, vector<8x16x128xbf16> -> vector<8x16x256xbf16>
    %31 = vector.shape_cast %30 : vector<8x16x256xbf16> to vector<128x256xbf16>
    %c0_2 = arith.constant 0 : index
    %c0_3 = arith.constant 0 : index
    %32 = vector.load %arg2[%c0_2, %c0_3] : memref<256x128xbf16, #tpu.memory_space<vmem>>, vector<256x128xbf16>
    %cst = arith.constant dense<0.000000e+00> : vector<128x128xf32>
    %33 = tpu.matmul %31, %32, %cst {dimension_numbers = #tpu.dot_dimension_numbers<[1], [0], [0], [1], [0, 0, 1, 1], [], []>} : vector<128x256xbf16>, vector<256x128xbf16>, vector<128x128xf32> -> vector<128x128xf32>
    %34 = vector.shape_cast %33 : vector<128x128xf32> to vector<8x16x128xf32>
    %c0_4 = arith.constant 0 : index
    %c0_5 = arith.constant 0 : index
    %35 = vector.load %arg3[%c0_4, %c0_5] : memref<1x128xf32, #tpu.memory_space<vmem>>, vector<1x128xf32>
    %36 = vector.shape_cast %35 : vector<1x128xf32> to vector<1x1x128xf32>
    %37 = vector.broadcast %36 : vector<1x1x128xf32> to vector<8x16x128xf32>
    %38 = arith.addf %34, %37 : vector<8x16x128xf32>
    %cst_6 = arith.constant 0.000000e+00 : f32
    %39 = vector.broadcast %cst_6 : f32 to vector<8x16x128xf32>
    %40 = arith.maximumf %38, %39 : vector<8x16x128xf32>
    %c0_7 = arith.constant 0 : index
    %c0_8 = arith.constant 0 : index
    %41 = vector.load %arg4[%c0_7, %c0_8] : memref<16x128xf32, #tpu.memory_space<vmem>>, vector<16x128xf32>
    %42 = vector.shape_cast %41 : vector<16x128xf32> to vector<1x16x128xf32>
    %43 = vector.broadcast %42 : vector<1x16x128xf32> to vector<8x16x128xf32>
    %44 = arith.mulf %40, %43 : vector<8x16x128xf32>
    %cst_9 = arith.constant dense<0xFF800000> : vector<8x128xf32>
    %45 = vector.multi_reduction <maximumf>, %44, %cst_9 [1] : vector<8x16x128xf32> to vector<8x128xf32>
    %c0_10 = arith.constant 0 : index
    %c0_11 = arith.constant 0 : index
    %46 = vector.load %arg5[%c0_10, %c0_11] : memref<8x128xf32, #tpu.memory_space<vmem>>, vector<8x128xf32>
    tpu.vector_store %arg5[%c0_10, %c0_11], %45 {strides = array<i32>} : memref<8x128xf32, #tpu.memory_space<vmem>>, vector<8x128xf32>,
    return
  }
  func.func @transform_0(%arg0: i32) -> (i32, i32) {
    %c0_i32 = arith.constant 0 : i32
    %c0_i32_0 = arith.constant 0 : i32
    return %arg0, %c0_i32 : i32, i32
  }
  func.func @transform_1(%arg0: i32) -> (i32, i32) {
    %c0_i32 = arith.constant 0 : i32
    %c0_i32_0 = arith.constant 0 : i32
    %c0_i32_1 = arith.constant 0 : i32
    return %c0_i32, %c0_i32_0 : i32, i32
  }
  func.func @transform_2(%arg0: i32) -> (i32, i32) {
    %c0_i32 = arith.constant 0 : i32
    %c0_i32_0 = arith.constant 0 : i32
    %c0_i32_1 = arith.constant 0 : i32
    return %c0_i32, %c0_i32_0 : i32, i32
  }
  func.func @transform_3(%arg0: i32) -> (i32, i32) {
    %c0_i32 = arith.constant 0 : i32
    %c0_i32_0 = arith.constant 0 : i32
    %c0_i32_1 = arith.constant 0 : i32
    return %c0_i32, %c0_i32_0 : i32, i32
  }
  func.func @transform_4(%arg0: i32) -> (i32, i32) {
    %c0_i32 = arith.constant 0 : i32
    %c0_i32_0 = arith.constant 0 : i32
    return %arg0, %c0_i32 : i32, i32
  }
}

</mosaic_0001>

<llo_original>
// kernel: character_embedding_forward.1
$region0: #{character_embedding_forward.1}
  #allocation0 [shape = 'u32[]', space=smem, size = 0x4, offset = 0x4, fixed_abs, tag = 'smem constant byte address 0x4 - core index']
  #allocation1 [shape = 'u32[144,128]{1,0:T(1,128)}', space=vmem, size = 0x12000, scoped, tag = 'internal scratch']
  %s0 = inlined_call_operand.vmem [shape: s32[16,24], index: 0, kind: input, shape index: {}]
  %s1 = inlined_call_operand.vmem [shape: bf16[256,128], index: 1, kind: input, shape index: {}]
  %s2 = inlined_call_operand.vmem [shape: f32[1,128], index: 2, kind: input, shape index: {}]
  %s3 = inlined_call_operand.vmem [shape: f32[16,128], index: 3, kind: input, shape index: {}]
  %s4 = inlined_call_operand.vmem [shape: f32[16,128], index: 4, kind: output, shape index: {}]
  %s5 = sld [smem:[#allocation0]]
  $region49: #{character_embedding_forward.1} parent=0
    _
  %s7 = ssub.s32 1, %s5
  %s8 = scalar_select 0, %s7, %s5
  loop: start=0, step=1, limit=4
  $region2: #{character_embedding_forward.1} parent=0 // loop_pre_header
    _
  $region3: #{character_embedding_forward.1} parent=0 // loop_header
    %s10 = sphi 0, %s14
    %p11 = scmp.ge.s32.totalorder %s10, 4
    %s20 = sphi 0, %s22
    %s23 = sphi 0, %s20
    %s24 = sphi 0, %s23
    %s40 = sphi 0, %s24
    %s44 = sphi 0, %s44
    %s46 = sphi 0, %s44
    %s47 = sphi 0, %s46
    %s61 = sphi 0, %s47
    %s65 = sphi 0, %s65
    %s67 = sphi 0, %s65
    %s68 = sphi 0, %s67
    %s82 = sphi 0, %s68
    %s86 = sphi 0, %s86
    %s88 = sphi 0, %s86
    %s89 = sphi 0, %s88
    %s103 = sphi 0, %s89
    %s109 = sphi 0, %s111
    %s112 = sphi 0, %s109
    %s113 = sphi 0, %s112
    %s129 = sphi 0, %s113
  $region4: #{character_embedding_forward.1} parent=0 // loop_header_branch
    %13 = sbr.rel (%p11) target = $region8
  $region5: #{character_embedding_forward.1} parent=0 // loop_body
    %s15 = ssub.s32 %s10, 1
    %s16 = ssub.s32 %s10, 2
    %s17 = sadd.s32 %s10, 1
    %s18 = ssub.s32 %s10, %s17
    %p19 = scmp.eq.s32.totalorder %s18, 0
    %s21 = sadd.s32 %s20, 1
    %s22 = scalar_select %p19, %s20, %s21
    %p25 = pneg %p19
    %p26 = scmp.eq.s32.totalorder %s10, 1
    %p27 = por %p25, %p26
    %p28 = scmp.ne.s32.totalorder %s20, %s23
    %p29 = scmp.eq.s32.totalorder %s10, 0
    %p30 = por %p28, %p29
    %p31 = scmp.ne.s32.totalorder %s20, %s23
    %p32 = scmp.eq.s32.totalorder %s15, 1
    %p33 = por %p31, %p32
    %p34 = scmp.ne.s32.totalorder %s23, %s24
    %p35 = scmp.eq.s32.totalorder %s15, 0
    %p36 = por %p34, %p35
    %p37 = scmp.ne.s32.totalorder %s23, %s24
    %p38 = scmp.eq.s32.totalorder %s16, 1
    %p39 = por %p37, %p38
    %p41 = scmp.ne.s32.totalorder %s24, %s40
    %p42 = scmp.eq.s32.totalorder %s16, 0
    %p43 = por %p41, %p42
    %s45 = sadd.s32 %s44, 1
    %p48 = scmp.eq.s32.totalorder %s10, 1
    %p49 = scmp.ne.s32.totalorder %s44, %s46
    %p50 = scmp.eq.s32.totalorder %s10, 0
    %p51 = por %p49, %p50
    %p52 = scmp.ne.s32.totalorder %s44, %s46
    %p53 = scmp.eq.s32.totalorder %s15, 1
    %p54 = por %p52, %p53
    %p55 = scmp.ne.s32.totalorder %s46, %s47
    %p56 = scmp.eq.s32.totalorder %s15, 0
    %p57 = por %p55, %p56
    %p58 = scmp.ne.s32.totalorder %s46, %s47
    %p59 = scmp.eq.s32.totalorder %s16, 1
    %p60 = por %p58, %p59
    %p62 = scmp.ne.s32.totalorder %s47, %s61
    %p63 = scmp.eq.s32.totalorder %s16, 0
    %p64 = por %p62, %p63
    %s66 = sadd.s32 %s65, 1
    %p69 = scmp.eq.s32.totalorder %s10, 1
    %p70 = scmp.ne.s32.totalorder %s65, %s67
    %p71 = scmp.eq.s32.totalorder %s10, 0
    %p72 = por %p70, %p71
    %p73 = scmp.ne.s32.totalorder %s65, %s67
    %p74 = scmp.eq.s32.totalorder %s15, 1
    %p75 = por %p73, %p74
    %p76 = scmp.ne.s32.totalorder %s67, %s68
    %p77 = scmp.eq.s32.totalorder %s15, 0
    %p78 = por %p76, %p77
    %p79 = scmp.ne.s32.totalorder %s67, %s68
    %p80 = scmp.eq.s32.totalorder %s16, 1
    %p81 = por %p79, %p80
    %p83 = scmp.ne.s32.totalorder %s68, %s82
    %p84 = scmp.eq.s32.totalorder %s16, 0
    %p85 = por %p83, %p84
    %s87 = sadd.s32 %s86, 1
    %p90 = scmp.eq.s32.totalorder %s10, 1
    %p91 = scmp.ne.s32.totalorder %s86, %s88
    %p92 = scmp.eq.s32.totalorder %s10, 0
    %p93 = por %p91, %p92
    %p94 = scmp.ne.s32.totalorder %s86, %s88
    %p95 = scmp.eq.s32.totalorder %s15, 1
    %p96 = por %p94, %p95
    %p97 = scmp.ne.s32.totalorder %s88, %s89
    %p98 = scmp.eq.s32.totalorder %s15, 0
    %p99 = por %p97, %p98
    %p100 = scmp.ne.s32.totalorder %s88, %s89
    %p101 = scmp.eq.s32.totalorder %s16, 1
    %p102 = por %p100, %p101
    %p104 = scmp.ne.s32.totalorder %s89, %s103
    %p105 = scmp.eq.s32.totalorder %s16, 0
    %p106 = por %p104, %p105
    %s107 = ssub.s32 %s10, %s17
    %p108 = scmp.eq.s32.totalorder %s107, 0
    %s110 = sadd.s32 %s109, 1
    %s111 = scalar_select %p108, %s109, %s110
    %p114 = pneg %p108
    %p115 = scmp.eq.s32.totalorder %s10, 1
    %p116 = por %p114, %p115
    %p117 = scmp.ne.s32.totalorder %s109, %s112
    %p118 = scmp.eq.s32.totalorder %s10, 0
    %p119 = por %p117, %p118
    %p120 = scmp.ne.s32.totalorder %s109, %s112
    %p121 = scmp.eq.s32.totalorder %s15, 1
    %p122 = por %p120, %p121
    %p123 = scmp.ne.s32.totalorder %s112, %s113
    %p124 = scmp.eq.s32.totalorder %s15, 0
    %p125 = por %p123, %p124
    %p126 = scmp.ne.s32.totalorder %s112, %s113
    %p127 = scmp.eq.s32.totalorder %s16, 1
    %p128 = por %p126, %p127
    %p130 = scmp.ne.s32.totalorder %s113, %s129
    %p131 = scmp.eq.s32.totalorder %s16, 0
    %p132 = por %p130, %p131
    %p133 = scmp.le.s32.totalorder 1, %s10
    %p134 = scmp.lt.s32.totalorder %s10, 3
    %p135 = pnand %p133, %p134
    %p136 = pneg %p135
    // Predicated region
    $region9: #{character_embedding_forward.1} parent=5 // pred_check
      _
    $region10: #{character_embedding_forward.1} parent=5 // pred_check_branch
      %138 = sbr.rel (%p135) target = $region12
    $region11: #{character_embedding_forward.1} parent=5 // pred_region
      %s139 = ssub.s32 %s10, 1
      // Predicated region
      $region13: #{character_embedding_forward.1} parent=11 // pred_check
        %p140 = pneg %p57
      $region14: #{character_embedding_forward.1} parent=11 // pred_check_branch
        %142 = sbr.rel (%p140) target = $region16
      $region15: #{character_embedding_forward.1} parent=11 // pred_region
        _
      $region16: #{character_embedding_forward.1} parent=11 // pred_fallthru
        _
      // Predicated region
      $region17: #{character_embedding_forward.1} parent=11 // pred_check
        %p143 = pneg %p78
      $region18: #{character_embedding_forward.1} parent=11 // pred_check_branch
        %145 = sbr.rel (%p143) target = $region20
      $region19: #{character_embedding_forward.1} parent=11 // pred_region
        _
      $region20: #{character_embedding_forward.1} parent=11 // pred_fallthru
        _
      // Predicated region
      $region21: #{character_embedding_forward.1} parent=11 // pred_check
        %p146 = pneg %p99
      $region22: #{character_embedding_forward.1} parent=11 // pred_check_branch
        %148 = sbr.rel (%p146) target = $region24
      $region23: #{character_embedding_forward.1} parent=11 // pred_region
        _
      $region24: #{character_embedding_forward.1} parent=11 // pred_fallthru
        _
    $region12: #{character_embedding_forward.1} parent=5 // pred_fallthru
      _
    %p149 = scmp.lt.s32.totalorder %s10, 2
    // Predicated region
    $region25: #{character_embedding_forward.1} parent=5 // pred_check
      %p150 = pneg %p149
    $region26: #{character_embedding_forward.1} parent=5 // pred_check_branch
      %152 = sbr.rel (%p150) target = $region28
    $region27: #{character_embedding_forward.1} parent=5 // pred_region
      // Predicated region
      $region29: #{character_embedding_forward.1} parent=27 // pred_check
        %p153 = pneg %p30
      $region30: #{character_embedding_forward.1} parent=27 // pred_check_branch
        %155 = sbr.rel (%p153) target = $region32
      $region31: #{character_embedding_forward.1} parent=27 // pred_region
        %p156 = scmp.lt.s32.totalorder %s10, 1
        %s157 = scalar_select %p156, %s10, 1
        %s158 = smul.addr %s157, 8
        %s159 = scalar_lea.vmem %s0, %s158
      $region32: #{character_embedding_forward.1} parent=27 // pred_fallthru
        _
    $region28: #{character_embedding_forward.1} parent=5 // pred_fallthru
      _
    %p160 = scmp.le.s32.totalorder 1, %s10
    %p161 = scmp.lt.s32.totalorder %s10, 3
    %p162 = pnand %p160, %p161
    %p163 = pneg %p162
    // Predicated region
    $region33: #{character_embedding_forward.1} parent=5 // pred_check
      _
    $region34: #{character_embedding_forward.1} parent=5 // pred_check_branch
      %165 = sbr.rel (%p162) target = $region36
    $region35: #{character_embedding_forward.1} parent=5 // pred_region
      %s166 = ssub.s32 %s10, 1
      %p167 = scmp.lt.s32.totalorder %s15, 1
      %s168 = scalar_select %p167, %s15, 1
      %s169 = smul.addr %s168, 8
      %s170 = scalar_lea.vmem %s0, %s169
      %p171 = pneg %p36
      %p172 = pneg %p33
      %p173 = pneg %p57
      %p174 = pneg %p54
      %p175 = pneg %p78
      %p176 = pneg %p75
      %p177 = pneg %p99
      %p178 = pneg %p96
      %p179 = pneg %p125
      %p180 = pneg %p122
      %p181 = scmp.lt.s32.totalorder %s15, 1
      %s182 = scalar_select %p181, %s15, 1
      %s183 = smul.addr %s182, 8
      %s184 = scalar_lea.vmem %s4, %s183
      %p185 = scmp.lt.s32.totalorder %s15, 1
      %s186 = scalar_select %p185, %s15, 1
      %s187 = smul.addr %s186, 8
      %s188 = scalar_lea.vmem %s0, %s187
      %p189 = scmp.lt.s32.totalorder %s15, 1
      %s190 = scalar_select %p189, %s15, 1
      %s191 = smul.addr %s190, 8
      %s192 = scalar_lea.vmem %s4, %s191
      %v194 = vld [vmem:[%s188] sm:$0xff]
      %v195 = vlaneseq
      %v196 = vand.u32 %v195, 127
      %v197 = vlaneseq
      %v198 = vshrl.u32 %v197, 7
      %v199 = vsub.s32 0, %v198
      %v200 = vrot.slane %v194, %v199
      %202 = vbcast.lane.b32.xlu0 %v200, 256
      %v203 = vpop.permute.xlu0 %202
      %s205 = sor.u32 256, 8
      %206 = vbcast.lane.b32.xlu0 %v200, %s205
      %v207 = vpop.permute.xlu0 %206
      %v208 = vlaneseq
      %v209 = vshrl.u32 %v208, 7
      %v210 = vsub.s32 1, %v209
      %v211 = vrot.slane %v194, %v210
      %213 = vbcast.lane.b32.xlu0 %v211, 256
      %v214 = vpop.permute.xlu0 %213
      %s216 = sor.u32 256, 8
      %217 = vbcast.lane.b32.xlu0 %v211, %s216
      %v218 = vpop.permute.xlu0 %217
      %v219 = vlaneseq
      %v220 = vshrl.u32 %v219, 7
      %v221 = vsub.s32 2, %v220
      %v222 = vrot.slane %v194, %v221
      %224 = vbcast.lane.b32.xlu0 %v222, 256
      %v225 = vpop.permute.xlu0 %224
      %s227 = sor.u32 256, 8
      %228 = vbcast.lane.b32.xlu0 %v222, %s227
      %v229 = vpop.permute.xlu0 %228
      %v230 = vlaneseq
      %v231 = vshrl.u32 %v230, 7
      %v232 = vsub.s32 3, %v231
      %v233 = vrot.slane %v194, %v232
      %235 = vbcast.lane.b32.xlu0 %v233, 256
      %v236 = vpop.permute.xlu0 %235
      %s238 = sor.u32 256, 8
      %239 = vbcast.lane.b32.xlu0 %v233, %s238
      %v240 = vpop.permute.xlu0 %239
      %v241 = vlaneseq
      %v242 = vshrl.u32 %v241, 7
      %v243 = vsub.s32 4, %v242
      %v244 = vrot.slane %v194, %v243
      %246 = vbcast.lane.b32.xlu0 %v244, 256
      %v247 = vpop.permute.xlu0 %246
      %s249 = sor.u32 256, 8
      %250 = vbcast.lane.b32.xlu0 %v244, %s249
      %v251 = vpop.permute.xlu0 %250
      %v252 = vlaneseq
      %v253 = vshrl.u32 %v252, 7
      %v254 = vsub.s32 5, %v253
      %v255 = vrot.slane %v194, %v254
      %257 = vbcast.lane.b32.xlu0 %v255, 256
      %v258 = vpop.permute.xlu0 %257
      %s260 = sor.u32 256, 8
      %261 = vbcast.lane.b32.xlu0 %v255, %s260
      %v262 = vpop.permute.xlu0 %261
      %v263 = vlaneseq
      %v264 = vshrl.u32 %v263, 7
      %v265 = vsub.s32 6, %v264
      %v266 = vrot.slane %v194, %v265
      %268 = vbcast.lane.b32.xlu0 %v266, 256
      %v269 = vpop.permute.xlu0 %268
      %s271 = sor.u32 256, 8
      %272 = vbcast.lane.b32.xlu0 %v266, %s271
      %v273 = vpop.permute.xlu0 %272
      %v274 = vlaneseq
      %v275 = vshrl.u32 %v274, 7
      %v276 = vsub.s32 7, %v275
      %v277 = vrot.slane %v194, %v276
      %279 = vbcast.lane.b32.xlu0 %v277, 256
      %v280 = vpop.permute.xlu0 %279
      %s282 = sor.u32 256, 8
      %283 = vbcast.lane.b32.xlu0 %v277, %s282
      %v284 = vpop.permute.xlu0 %283
      %vm285 = vcmp.eq.s32.totalorder %v196, %v203
      %vm286 = vcmp.eq.s32.totalorder %v196, %v207
      %vm287 = vcmp.eq.s32.totalorder %v196, %v214
      %vm288 = vcmp.eq.s32.totalorder %v196, %v218
      %vm289 = vcmp.eq.s32.totalorder %v196, %v225
      %vm290 = vcmp.eq.s32.totalorder %v196, %v229
      %vm291 = vcmp.eq.s32.totalorder %v196, %v236
      %vm292 = vcmp.eq.s32.totalorder %v196, %v240
      %vm293 = vcmp.eq.s32.totalorder %v196, %v247
      %vm294 = vcmp.eq.s32.totalorder %v196, %v251
      %vm295 = vcmp.eq.s32.totalorder %v196, %v258
      %vm296 = vcmp.eq.s32.totalorder %v196, %v262
      %vm297 = vcmp.eq.s32.totalorder %v196, %v269
      %vm298 = vcmp.eq.s32.totalorder %v196, %v273
      %vm299 = vcmp.eq.s32.totalorder %v196, %v280
      %vm300 = vcmp.eq.s32.totalorder %v196, %v284
      %s302 = sor.u32 256, 1
      %303 = vbcast.lane.b32.xlu0 %v200, %s302
      %v304 = vpop.permute.xlu0 %303
      %s306 = sor.u32 256, 9
      %307 = vbcast.lane.b32.xlu0 %v200, %s306
      %v308 = vpop.permute.xlu0 %307
      %s310 = sor.u32 256, 1
      %311 = vbcast.lane.b32.xlu0 %v211, %s310
      %v312 = vpop.permute.xlu0 %311
      %s314 = sor.u32 256, 9
      %315 = vbcast.lane.b32.xlu0 %v211, %s314
      %v316 = vpop.permute.xlu0 %315
      %s318 = sor.u32 256, 1
      %319 = vbcast.lane.b32.xlu0 %v222, %s318
      %v320 = vpop.permute.xlu0 %319
      %s322 = sor.u32 256, 9
      %323 = vbcast.lane.b32.xlu0 %v222, %s322
      %v324 = vpop.permute.xlu0 %323
      %s326 = sor.u32 256, 1
      %327 = vbcast.lane.b32.xlu0 %v233, %s326
      %v328 = vpop.permute.xlu0 %327
      %s330 = sor.u32 256, 9
      %331 = vbcast.lane.b32.xlu0 %v233, %s330
      %v332 = vpop.permute.xlu0 %331
      %s334 = sor.u32 256, 1
      %335 = vbcast.lane.b32.xlu0 %v244, %s334
      %v336 = vpop.permute.xlu0 %335
      %s338 = sor.u32 256, 9
      %339 = vbcast.lane.b32.xlu0 %v244, %s338
      %v340 = vpop.permute.xlu0 %339
      %s342 = sor.u32 256, 1
      %343 = vbcast.lane.b32.xlu0 %v255, %s342
      %v344 = vpop.permute.xlu0 %343
      %s346 = sor.u32 256, 9
      %347 = vbcast.lane.b32.xlu0 %v255, %s346
      %v348 = vpop.permute.xlu0 %347
      %s350 = sor.u32 256, 1
      %351 = vbcast.lane.b32.xlu0 %v266, %s350
      %v352 = vpop.permute.xlu0 %351
      %s354 = sor.u32 256, 9
      %355 = vbcast.lane.b32.xlu0 %v266, %s354
      %v356 = vpop.permute.xlu0 %355
      %s358 = sor.u32 256, 1
      %359 = vbcast.lane.b32.xlu0 %v277, %s358
      %v360 = vpop.permute.xlu0 %359
      %s362 = sor.u32 256, 9
      %363 = vbcast.lane.b32.xlu0 %v277, %s362
      %v364 = vpop.permute.xlu0 %363
      %v365 = vadd.s32 %v304, 64
      %v366 = vadd.s32 %v308, 64
      %v367 = vadd.s32 %v312, 64
      %v368 = vadd.s32 %v316, 64
      %v369 = vadd.s32 %v320, 64
      %v370 = vadd.s32 %v324, 64
      %v371 = vadd.s32 %v328, 64
      %v372 = vadd.s32 %v332, 64
      %v373 = vadd.s32 %v336, 64
      %v374 = vadd.s32 %v340, 64
      %v375 = vadd.s32 %v344, 64
      %v376 = vadd.s32 %v348, 64
      %v377 = vadd.s32 %v352, 64
      %v378 = vadd.s32 %v356, 64
      %v379 = vadd.s32 %v360, 64
      %v380 = vadd.s32 %v364, 64
      %vm381 = vcmp.eq.s32.totalorder %v196, %v365
      %vm382 = vcmp.eq.s32.totalorder %v196, %v366
      %vm383 = vcmp.eq.s32.totalorder %v196, %v367
      %vm384 = vcmp.eq.s32.totalorder %v196, %v368
      %vm385 = vcmp.eq.s32.totalorder %v196, %v369
      %vm386 = vcmp.eq.s32.totalorder %v196, %v370
      %vm387 = vcmp.eq.s32.totalorder %v196, %v371
      %vm388 = vcmp.eq.s32.totalorder %v196, %v372
      %vm389 = vcmp.eq.s32.totalorder %v196, %v373
      %vm390 = vcmp.eq.s32.totalorder %v196, %v374
      %vm391 = vcmp.eq.s32.totalorder %v196, %v375
      %vm392 = vcmp.eq.s32.totalorder %v196, %v376
      %vm393 = vcmp.eq.s32.totalorder %v196, %v377
      %vm394 = vcmp.eq.s32.totalorder %v196, %v378
      %vm395 = vcmp.eq.s32.totalorder %v196, %v379
      %vm396 = vcmp.eq.s32.totalorder %v196, %v380
      %vm397 = vmor %vm285, %vm381
      %vm398 = vmor %vm286, %vm382
      %vm399 = vmor %vm287, %vm383
      %vm400 = vmor %vm288, %vm384
      %vm401 = vmor %vm289, %vm385
      %vm402 = vmor %vm290, %vm386
      %vm403 = vmor %vm291, %vm387
      %vm404 = vmor %vm292, %vm388
      %vm405 = vmor %vm293, %vm389
      %vm406 = vmor %vm294, %vm390
      %vm407 = vmor %vm295, %vm391
      %vm408 = vmor %vm296, %vm392
      %vm409 = vmor %vm297, %vm393
      %vm410 = vmor %vm298, %vm394
      %vm411 = vmor %vm299, %vm395
      %vm412 = vmor %vm300, %vm396
      %v413 = vsel %vm397, 1, 0
      %v414 = vsel %vm398, 1, 0
      %v415 = vsel %vm399, 1, 0
      %v416 = vsel %vm400, 1, 0
      %v417 = vsel %vm401, 1, 0
      %v418 = vsel %vm402, 1, 0
      %v419 = vsel %vm403, 1, 0
      %v420 = vsel %vm404, 1, 0
      %v421 = vsel %vm405, 1, 0
      %v422 = vsel %vm406, 1, 0
      %v423 = vsel %vm407, 1, 0
      %v424 = vsel %vm408, 1, 0
      %v425 = vsel %vm409, 1, 0
      %v426 = vsel %vm410, 1, 0
      %v427 = vsel %vm411, 1, 0
      %v428 = vsel %vm412, 1, 0
      %v429 = vcvt.s32.f32 %v413
      %v430 = vcvt.s32.f32 %v414
      %v431 = vcvt.s32.f32 %v415
      %v432 = vcvt.s32.f32 %v416
      %v433 = vcvt.s32.f32 %v417
      %v434 = vcvt.s32.f32 %v418
      %v435 = vcvt.s32.f32 %v419
      %v436 = vcvt.s32.f32 %v420
      %v437 = vcvt.s32.f32 %v421
      %v438 = vcvt.s32.f32 %v422
      %v439 = vcvt.s32.f32 %v423
      %v440 = vcvt.s32.f32 %v424
      %v441 = vcvt.s32.f32 %v425
      %v442 = vcvt.s32.f32 %v426
      %v443 = vcvt.s32.f32 %v427
      %v444 = vcvt.s32.f32 %v428
      %v445 = vpack.c.bf16 %v430, %v429
      %v446 = vpack.c.bf16 %v432, %v431
      %v447 = vpack.c.bf16 %v434, %v433
      %v448 = vpack.c.bf16 %v436, %v435
      %v449 = vpack.c.bf16 %v438, %v437
      %v450 = vpack.c.bf16 %v440, %v439
      %v451 = vpack.c.bf16 %v442, %v441
      %v452 = vpack.c.bf16 %v444, %v443
      %s454 = sor.u32 256, 2
      %455 = vbcast.lane.b32.xlu0 %v200, %s454
      %v456 = vpop.permute.xlu0 %455
      %s458 = sor.u32 256, 10
      %459 = vbcast.lane.b32.xlu0 %v200, %s458
      %v460 = vpop.permute.xlu0 %459
      %s462 = sor.u32 256, 2
      %463 = vbcast.lane.b32.xlu0 %v211, %s462
      %v464 = vpop.permute.xlu0 %463
      %s466 = sor.u32 256, 10
      %467 = vbcast.lane.b32.xlu0 %v211, %s466
      %v468 = vpop.permute.xlu0 %467
      %s470 = sor.u32 256, 2
      %471 = vbcast.lane.b32.xlu0 %v222, %s470
      %v472 = vpop.permute.xlu0 %471
      %s474 = sor.u32 256, 10
      %475 = vbcast.lane.b32.xlu0 %v222, %s474
      %v476 = vpop.permute.xlu0 %475
      %s478 = sor.u32 256, 2
      %479 = vbcast.lane.b32.xlu0 %v233, %s478
      %v480 = vpop.permute.xlu0 %479
      %s482 = sor.u32 256, 10
      %483 = vbcast.lane.b32.xlu0 %v233, %s482
      %v484 = vpop.permute.xlu0 %483
      %s486 = sor.u32 256, 2
      %487 = vbcast.lane.b32.xlu0 %v244, %s486
      %v488 = vpop.permute.xlu0 %487
      %s490 = sor.u32 256, 10
      %491 = vbcast.lane.b32.xlu0 %v244, %s490
      %v492 = vpop.permute.xlu0 %491
      %s494 = sor.u32 256, 2
      %495 = vbcast.lane.b32.xlu0 %v255, %s494
      %v496 = vpop.permute.xlu0 %495
      %s498 = sor.u32 256, 10
      %499 = vbcast.lane.b32.xlu0 %v255, %s498
      %v500 = vpop.permute.xlu0 %499
      %s502 = sor.u32 256, 2
      %503 = vbcast.lane.b32.xlu0 %v266, %s502
      %v504 = vpop.permute.xlu0 %503
      %s506 = sor.u32 256, 10
      %507 = vbcast.lane.b32.xlu0 %v266, %s506
      %v508 = vpop.permute.xlu0 %507
      %s510 = sor.u32 256, 2
      %511 = vbcast.lane.b32.xlu0 %v277, %s510
      %v512 = vpop.permute.xlu0 %511
      %s514 = sor.u32 256, 10
      %515 = vbcast.lane.b32.xlu0 %v277, %s514
      %v516 = vpop.permute.xlu0 %515
      %vm517 = vcmp.eq.s32.totalorder %v196, %v456
      %vm518 = vcmp.eq.s32.totalorder %v196, %v460
      %vm519 = vcmp.eq.s32.totalorder %v196, %v464
      %vm520 = vcmp.eq.s32.totalorder %v196, %v468
      %vm521 = vcmp.eq.s32.totalorder %v196, %v472
      %vm522 = vcmp.eq.s32.totalorder %v196, %v476
      %vm523 = vcmp.eq.s32.totalorder %v196, %v480
      %vm524 = vcmp.eq.s32.totalorder %v196, %v484
      %vm525 = vcmp.eq.s32.totalorder %v196, %v488
      %vm526 = vcmp.eq.s32.totalorder %v196, %v492
      %vm527 = vcmp.eq.s32.totalorder %v196, %v496
      %vm528 = vcmp.eq.s32.totalorder %v196, %v500
      %vm529 = vcmp.eq.s32.totalorder %v196, %v504
      %vm530 = vcmp.eq.s32.totalorder %v196, %v508
      %vm531 = vcmp.eq.s32.totalorder %v196, %v512
      %vm532 = vcmp.eq.s32.totalorder %v196, %v516
      %s534 = sor.u32 256, 3
      %535 = vbcast.lane.b32.xlu0 %v200, %s534
      %v536 = vpop.permute.xlu0 %535
      %s538 = sor.u32 256, 11
      %539 = vbcast.lane.b32.xlu0 %v200, %s538
      %v540 = vpop.permute.xlu0 %539
      %s542 = sor.u32 256, 3
      %543 = vbcast.lane.b32.xlu0 %v211, %s542
      %v544 = vpop.permute.xlu0 %543
      %s546 = sor.u32 256, 11
      %547 = vbcast.lane.b32.xlu0 %v211, %s546
      %v548 = vpop.permute.xlu0 %547
      %s550 = sor.u32 256, 3
      %551 = vbcast.lane.b32.xlu0 %v222, %s550
      %v552 = vpop.permute.xlu0 %551
      %s554 = sor.u32 256, 11
      %555 = vbcast.lane.b32.xlu0 %v222, %s554
      %v556 = vpop.permute.xlu0 %555
      %s558 = sor.u32 256, 3
      %559 = vbcast.lane.b32.xlu0 %v233, %s558
      %v560 = vpop.permute.xlu0 %559
      %s562 = sor.u32 256, 11
      %563 = vbcast.lane.b32.xlu0 %v233, %s562
      %v564 = vpop.permute.xlu0 %563
      %s566 = sor.u32 256, 3
      %567 = vbcast.lane.b32.xlu0 %v244, %s566
      %v568 = vpop.permute.xlu0 %567
      %s570 = sor.u32 256, 11
      %571 = vbcast.lane.b32.xlu0 %v244, %s570
      %v572 = vpop.permute.xlu0 %571
      %s574 = sor.u32 256, 3
      %575 = vbcast.lane.b32.xlu0 %v255, %s574
      %v576 = vpop.permute.xlu0 %575
      %s578 = sor.u32 256, 11
      %579 = vbcast.lane.b32.xlu0 %v255, %s578
      %v580 = vpop.permute.xlu0 %579
      %s582 = sor.u32 256, 3
      %583 = vbcast.lane.b32.xlu0 %v266, %s582
      %v584 = vpop.permute.xlu0 %583
      %s586 = sor.u32 256, 11
      %587 = vbcast.lane.b32.xlu0 %v266, %s586
      %v588 = vpop.permute.xlu0 %587
      %s590 = sor.u32 256, 3
      %591 = vbcast.lane.b32.xlu0 %v277, %s590
      %v592 = vpop.permute.xlu0 %591
      %s594 = sor.u32 256, 11
      %595 = vbcast.lane.b32.xlu0 %v277, %s594
      %v596 = vpop.permute.xlu0 %595
      %v597 = vadd.s32 %v536, 64
      %v598 = vadd.s32 %v540, 64
      %v599 = vadd.s32 %v544, 64
      %v600 = vadd.s32 %v548, 64
      %v601 = vadd.s32 %v552, 64
      %v602 = vadd.s32 %v556, 64
      %v603 = vadd.s32 %v560, 64
      %v604 = vadd.s32 %v564, 64
      %v605 = vadd.s32 %v568, 64
      %v606 = vadd.s32 %v572, 64
      %v607 = vadd.s32 %v576, 64
      %v608 = vadd.s32 %v580, 64
      %v609 = vadd.s32 %v584, 64
      %v610 = vadd.s32 %v588, 64
      %v611 = vadd.s32 %v592, 64
      %v612 = vadd.s32 %v596, 64
      %vm613 = vcmp.eq.s32.totalorder %v196, %v597
      %vm614 = vcmp.eq.s32.totalorder %v196, %v598
      %vm615 = vcmp.eq.s32.totalorder %v196, %v599
      %vm616 = vcmp.eq.s32.totalorder %v196, %v600
      %vm617 = vcmp.eq.s32.totalorder %v196, %v601
      %vm618 = vcmp.eq.s32.totalorder %v196, %v602
      %vm619 = vcmp.eq.s32.totalorder %v196, %v603
      %vm620 = vcmp.eq.s32.totalorder %v196, %v604
      %vm621 = vcmp.eq.s32.totalorder %v196, %v605
      %vm622 = vcmp.eq.s32.totalorder %v196, %v606
      %vm623 = vcmp.eq.s32.totalorder %v196, %v607
      %vm624 = vcmp.eq.s32.totalorder %v196, %v608
      %vm625 = vcmp.eq.s32.totalorder %v196, %v609
      %vm626 = vcmp.eq.s32.totalorder %v196, %v610
      %vm627 = vcmp.eq.s32.totalorder %v196, %v611
      %vm628 = vcmp.eq.s32.totalorder %v196, %v612
      %vm629 = vmor %vm517, %vm613
      %vm630 = vmor %vm518, %vm614
      %vm631 = vmor %vm519, %vm615
      %vm632 = vmor %vm520, %vm616
      %vm633 = vmor %vm521, %vm617
      %vm634 = vmor %vm522, %vm618
      %vm635 = vmor %vm523, %vm619
      %vm636 = vmor %vm524, %vm620
      %vm637 = vmor %vm525, %vm621
      %vm638 = vmor %vm526, %vm622
      %vm639 = vmor %vm527, %vm623
      %vm640 = vmor %vm528, %vm624
      %vm641 = vmor %vm529, %vm625
      %vm642 = vmor %vm530, %vm626
      %vm643 = vmor %vm531, %vm627
      %vm644 = vmor %vm532, %vm628
      %v645 = vsel %vm629, 1, 0
      %v646 = vsel %vm630, 1, 0
      %v647 = vsel %vm631, 1, 0
      %v648 = vsel %vm632, 1, 0
      %v649 = vsel %vm633, 1, 0
      %v650 = vsel %vm634, 1, 0
      %v651 = vsel %vm635, 1, 0
      %v652 = vsel %vm636, 1, 0
      %v653 = vsel %vm637, 1, 0
      %v654 = vsel %vm638, 1, 0
      %v655 = vsel %vm639, 1, 0
      %v656 = vsel %vm640, 1, 0
      %v657 = vsel %vm641, 1, 0
      %v658 = vsel %vm642, 1, 0
      %v659 = vsel %vm643, 1, 0
      %v660 = vsel %vm644, 1, 0
      %v661 = vcvt.s32.f32 %v645
      %v662 = vcvt.s32.f32 %v646
      %v663 = vcvt.s32.f32 %v647
      %v664 = vcvt.s32.f32 %v648
      %v665 = vcvt.s32.f32 %v649
      %v666 = vcvt.s32.f32 %v650
      %v667 = vcvt.s32.f32 %v651
      %v668 = vcvt.s32.f32 %v652
      %v669 = vcvt.s32.f32 %v653
      %v670 = vcvt.s32.f32 %v654
      %v671 = vcvt.s32.f32 %v655
      %v672 = vcvt.s32.f32 %v656
      %v673 = vcvt.s32.f32 %v657
      %v674 = vcvt.s32.f32 %v658
      %v675 = vcvt.s32.f32 %v659
      %v676 = vcvt.s32.f32 %v660
      %v677 = vpack.c.bf16 %v662, %v661
      %v678 = vpack.c.bf16 %v664, %v663
      %v679 = vpack.c.bf16 %v666, %v665
      %v680 = vpack.c.bf16 %v668, %v667
      %v681 = vpack.c.bf16 %v670, %v669
      %v682 = vpack.c.bf16 %v672, %v671
      %v683 = vpack.c.bf16 %v674, %v673
      %v684 = vpack.c.bf16 %v676, %v675
      %v685 = vld [vmem:[%s1] sm:$0xf]
      %v686 = vld [vmem:[%s1 + $0x4] sm:$0xf]
      %v687 = vld [vmem:[%s1 + $0x8] sm:$0xf]
      %v688 = vld [vmem:[%s1 + $0xc] sm:$0xf]
      %v689 = vld [vmem:[%s1 + $0x10] sm:$0xf]
      %v690 = vld [vmem:[%s1 + $0x14] sm:$0xf]
      %v691 = vld [vmem:[%s1 + $0x18] sm:$0xf]
      %v692 = vld [vmem:[%s1 + $0x1c] sm:$0xf]
      %v693 = vld [vmem:[%s1 + $0x20] sm:$0xf]
      %v694 = vld [vmem:[%s1 + $0x24] sm:$0xf]
      %v695 = vld [vmem:[%s1 + $0x28] sm:$0xf]
      %v696 = vld [vmem:[%s1 + $0x2c] sm:$0xf]
      %v697 = vld [vmem:[%s1 + $0x30] sm:$0xf]
      %v698 = vld [vmem:[%s1 + $0x34] sm:$0xf]
      %v699 = vld [vmem:[%s1 + $0x38] sm:$0xf]
      %v700 = vld [vmem:[%s1 + $0x3c] sm:$0xf]
      %v701 = vld [vmem:[%s1 + $0x40] sm:$0xf]
      %v702 = vld [vmem:[%s1 + $0x44] sm:$0xf]
      %v703 = vld [vmem:[%s1 + $0x48] sm:$0xf]
      %v704 = vld [vmem:[%s1 + $0x4c] sm:$0xf]
      %v705 = vld [vmem:[%s1 + $0x50] sm:$0xf]
      %v706 = vld [vmem:[%s1 + $0x54] sm:$0xf]
      %v707 = vld [vmem:[%s1 + $0x58] sm:$0xf]
      %v708 = vld [vmem:[%s1 + $0x5c] sm:$0xf]
      %v709 = vld [vmem:[%s1 + $0x60] sm:$0xf]
      %v710 = vld [vmem:[%s1 + $0x64] sm:$0xf]
      %v711 = vld [vmem:[%s1 + $0x68] sm:$0xf]
      %v712 = vld [vmem:[%s1 + $0x6c] sm:$0xf]
      %v713 = vld [vmem:[%s1 + $0x70] sm:$0xf]
      %v714 = vld [vmem:[%s1 + $0x74] sm:$0xf]
      %v715 = vld [vmem:[%s1 + $0x78] sm:$0xf]
      %v716 = vld [vmem:[%s1 + $0x7c] sm:$0xf]
      %v749 = vunpack.c.l.b16 %v685
      %v750 = vunpack.c.l.b16 %v686
      %v751 = vunpack.c.l.b16 %v687
      %v752 = vunpack.c.l.b16 %v688
      %v753 = vunpack.c.l.b16 %v689
      %v754 = vunpack.c.l.b16 %v690
      %v755 = vunpack.c.l.b16 %v691
      %v756 = vunpack.c.l.b16 %v692
      %v757 = vunpack.c.l.b16 %v693
      %v758 = vunpack.c.l.b16 %v694
      %v759 = vunpack.c.l.b16 %v695
      %v760 = vunpack.c.l.b16 %v696
      %v761 = vunpack.c.l.b16 %v697
      %v762 = vunpack.c.l.b16 %v698
      %v763 = vunpack.c.l.b16 %v699
      %v764 = vunpack.c.l.b16 %v700
      %v765 = vunpack.c.l.b16 %v701
      %v766 = vunpack.c.l.b16 %v702
      %v767 = vunpack.c.l.b16 %v703
      %v768 = vunpack.c.l.b16 %v704
      %v769 = vunpack.c.l.b16 %v705
      %v770 = vunpack.c.l.b16 %v706
      %v771 = vunpack.c.l.b16 %v707
      %v772 = vunpack.c.l.b16 %v708
      %v773 = vunpack.c.l.b16 %v709
      %v774 = vunpack.c.l.b16 %v710
      %v775 = vunpack.c.l.b16 %v711
      %v776 = vunpack.c.l.b16 %v712
      %v777 = vunpack.c.l.b16 %v713
      %v778 = vunpack.c.l.b16 %v714
      %v779 = vunpack.c.l.b16 %v715
      %v780 = vunpack.c.l.b16 %v716
      %v781 = vpack.c.b16 %v750, %v749
      %v782 = vpack.c.b16 %v752, %v751
      %v783 = vpack.c.b16 %v754, %v753
      %v784 = vpack.c.b16 %v756, %v755
      %v785 = vpack.c.b16 %v758, %v757
      %v786 = vpack.c.b16 %v760, %v759
      %v787 = vpack.c.b16 %v762, %v761
      %v788 = vpack.c.b16 %v764, %v763
      %v789 = vpack.c.b16 %v766, %v765
      %v790 = vpack.c.b16 %v768, %v767
      %v791 = vpack.c.b16 %v770, %v769
      %v792 = vpack.c.b16 %v772, %v771
      %v793 = vpack.c.b16 %v774, %v773
      %v794 = vpack.c.b16 %v776, %v775
      %v795 = vpack.c.b16 %v778, %v777
      %v796 = vpack.c.b16 %v780, %v779
      %813 = vmatprep.subr.bf16.mxu0 0
      %814 = vmatpush1.bf16.msra.mxu0 %v781
      %815 = vmatprep.subr.bf16.mxu0 0
      %816 = vmatpush1.bf16.msra.mxu0 %v782
      %817 = vmatprep.subr.bf16.mxu0 0
      %818 = vmatpush1.bf16.msra.mxu0 %v783
      %819 = vmatprep.subr.bf16.mxu0 0
      %820 = vmatpush1.bf16.msra.mxu0 %v784
      %821 = vmatprep.subr.bf16.mxu0 0
      %822 = vmatpush1.bf16.msra.mxu0 %v785
      %823 = vmatprep.subr.bf16.mxu0 0
      %824 = vmatpush1.bf16.msra.mxu0 %v786
      %825 = vmatprep.subr.bf16.mxu0 0
      %826 = vmatpush1.bf16.msra.mxu0 %v787
      %827 = vmatprep.subr.bf16.mxu0 0
      %828 = vmatpush1.bf16.msra.mxu0 %v788
      %829 = vmatprep.subr.bf16.mxu0 0
      %830 = vmatpush1.bf16.msra.mxu0 %v789
      %831 = vmatprep.subr.bf16.mxu0 0
      %832 = vmatpush1.bf16.msra.mxu0 %v790
      %833 = vmatprep.subr.bf16.mxu0 0
      %834 = vmatpush1.bf16.msra.mxu0 %v791
      %835 = vmatprep.subr.bf16.mxu0 0
      %836 = vmatpush1.bf16.msra.mxu0 %v792
      %837 = vmatprep.subr.bf16.mxu0 0
      %838 = vmatpush1.bf16.msra.mxu0 %v793
      %839 = vmatprep.subr.bf16.mxu0 0
      %840 = vmatpush1.bf16.msra.mxu0 %v794
      %841 = vmatprep.subr.bf16.mxu0 0
      %842 = vmatpush1.bf16.msra.mxu0 %v795
      %843 = vmatprep.subr.bf16.mxu0 0
      %844 = vmatpush1.bf16.msra.mxu0 %v796
      %845 = vmatprep.mubr.bf16.mxu0 %v677
      %846 = vmatmul.mubr.bf16.gmra.mrb[0].mxu0 %v445
      %v847 = vpop.f32.mrb[0].mxu0
      %v848 = vadd.f32 0.0, %v847
      %v849 = vpop.f32.mrb[0].mxu0
      %v850 = vpop.f32.mrb[0].mxu0
      %v851 = vadd.f32 0.0, %v850
      %v852 = vpop.f32.mrb[0].mxu0
      %853 = vmatprep.mubr.bf16.mxu0 %v678
      %854 = vmatmul.mubr.bf16.gmra.mrb[0].mxu0 %v446
      %v855 = vpop.f32.mrb[0].mxu0
      %v856 = vadd.f32 0.0, %v855
      %v857 = vpop.f32.mrb[0].mxu0
      %v858 = vpop.f32.mrb[0].mxu0
      %v859 = vadd.f32 0.0, %v858
      %v860 = vpop.f32.mrb[0].mxu0
      %861 = vmatprep.mubr.bf16.mxu0 %v679
      %862 = vmatmul.mubr.bf16.gmra.mrb[0].mxu0 %v447
      %v863 = vpop.f32.mrb[0].mxu0
      %v864 = vadd.f32 0.0, %v863
      %v865 = vpop.f32.mrb[0].mxu0
      %v866 = vpop.f32.mrb[0].mxu0
      %v867 = vadd.f32 0.0, %v866
      %v868 = vpop.f32.mrb[0].mxu0
      %869 = vmatprep.mubr.bf16.mxu0 %v680
      %870 = vmatmul.mubr.bf16.gmra.mrb[0].mxu0 %v448
      %v871 = vpop.f32.mrb[0].mxu0
      %v872 = vadd.f32 0.0, %v871
      %v873 = vpop.f32.mrb[0].mxu0
      %v874 = vpop.f32.mrb[0].mxu0
      %v875 = vadd.f32 0.0, %v874
      %v876 = vpop.f32.mrb[0].mxu0
      %877 = vmatprep.mubr.bf16.mxu0 %v681
      %878 = vmatmul.mubr.bf16.gmra.mrb[0].mxu0 %v449
      %v879 = vpop.f32.mrb[0].mxu0
      %v880 = vadd.f32 0.0, %v879
      %v881 = vpop.f32.mrb[0].mxu0
      %v882 = vpop.f32.mrb[0].mxu0
      %v883 = vadd.f32 0.0, %v882
      %v884 = vpop.f32.mrb[0].mxu0
      %885 = vmatprep.mubr.bf16.mxu0 %v682
      %886 = vmatmul.mubr.bf16.gmra.mrb[0].mxu0 %v450
      %v887 = vpop.f32.mrb[0].mxu0
      %v888 = vadd.f32 0.0, %v887
      %v889 = vpop.f32.mrb[0].mxu0
      %v890 = vpop.f32.mrb[0].mxu0
      %v891 = vadd.f32 0.0, %v890
      %v892 = vpop.f32.mrb[0].mxu0
      %893 = vmatprep.mubr.bf16.mxu0 %v683
      %894 = vmatmul.mubr.bf16.gmra.mrb[0].mxu0 %v451
      %v895 = vpop.f32.mrb[0].mxu0
      %v896 = vadd.f32 0.0, %v895
      %v897 = vpop.f32.mrb[0].mxu0
      %v898 = vpop.f32.mrb[0].mxu0
      %v899 = vadd.f32 0.0, %v898
      %v900 = vpop.f32.mrb[0].mxu0
      %901 = vmatprep.mubr.bf16.mxu0 %v684
      %902 = vmatmul.mubr.bf16.gmra.mrb[0].mxu0 %v452
      %v903 = vpop.f32.mrb[0].mxu0
      %v904 = vadd.f32 0.0, %v903
      %v905 = vpop.f32.mrb[0].mxu0
      %v906 = vpop.f32.mrb[0].mxu0
      %v907 = vadd.f32 0.0, %v906
      %v908 = vpop.f32.mrb[0].mxu0
      %909 = vdwg.mxu0
      %v910 = vld [vmem:[%s2] sm:$0x1]
      %v912 = vlaneseq
      %v913 = vshrl.u32 %v912, 7
      %v914 = vsub.s32 0, %v913
      %v915 = vrot.slane %v910, %v914
      %v917 = vadd.f32 %v848, %v915
      %v918 = vadd.f32 %v851, %v915
      %v919 = vadd.f32 %v856, %v915
      %v920 = vadd.f32 %v859, %v915
      %v921 = vadd.f32 %v864, %v915
      %v922 = vadd.f32 %v867, %v915
      %v923 = vadd.f32 %v872, %v915
      %v924 = vadd.f32 %v875, %v915
      %v925 = vadd.f32 %v880, %v915
      %v926 = vadd.f32 %v883, %v915
      %v927 = vadd.f32 %v888, %v915
      %v928 = vadd.f32 %v891, %v915
      %v929 = vadd.f32 %v896, %v915
      %v930 = vadd.f32 %v899, %v915
      %v931 = vadd.f32 %v904, %v915
      %v932 = vadd.f32 %v907, %v915
      %v933 = vmax.f32 %v917, 0.0
      %v934 = vmax.f32 %v918, 0.0
      %v935 = vmax.f32 %v919, 0.0
      %v936 = vmax.f32 %v920, 0.0
      %v937 = vmax.f32 %v921, 0.0
      %v938 = vmax.f32 %v922, 0.0
      %v939 = vmax.f32 %v923, 0.0
      %v940 = vmax.f32 %v924, 0.0
      %v941 = vmax.f32 %v925, 0.0
      %v942 = vmax.f32 %v926, 0.0
      %v943 = vmax.f32 %v927, 0.0
      %v944 = vmax.f32 %v928, 0.0
      %v945 = vmax.f32 %v929, 0.0
      %v946 = vmax.f32 %v930, 0.0
      %v947 = vmax.f32 %v931, 0.0
      %v948 = vmax.f32 %v932, 0.0
      %v949 = vld [vmem:[%s3] sm:$0xff]
      %v950 = vld [vmem:[%s3 + $0x8] sm:$0xff]
      %v951 = vmul.f32 %v933, %v949
      %v952 = vmul.f32 %v934, %v950
      %v953 = vmul.f32 %v935, %v949
      %v954 = vmul.f32 %v936, %v950
      %v955 = vmul.f32 %v937, %v949
      %v956 = vmul.f32 %v938, %v950
      %v957 = vmul.f32 %v939, %v949
      %v958 = vmul.f32 %v940, %v950
      %v959 = vmul.f32 %v941, %v949
      %v960 = vmul.f32 %v942, %v950
      %v961 = vmul.f32 %v943, %v949
      %v962 = vmul.f32 %v944, %v950
      %v963 = vmul.f32 %v945, %v949
      %v964 = vmul.f32 %v946, %v950
      %v965 = vmul.f32 %v947, %v949
      %v966 = vmul.f32 %v948, %v950
      %v967 = vmax.f32 %v951, %v952
      %v968 = vrot.slane %v967, 4
      %v969 = vmax.f32 %v967, %v968
      %v970 = vrot.slane %v969, 2
      %v971 = vmax.f32 %v969, %v970
      %v972 = vrot.slane %v971, 1
      %v973 = vmax.f32 %v971, %v972
      %v974 = vmax.f32 %v953, %v954
      %v975 = vrot.slane %v974, 4
      %v976 = vmax.f32 %v974, %v975
      %v977 = vrot.slane %v976, 2
      %v978 = vmax.f32 %v976, %v977
      %v979 = vrot.slane %v978, 1
      %v980 = vmax.f32 %v978, %v979
      %v981 = vmax.f32 %v955, %v956
      %v982 = vrot.slane %v981, 4
      %v983 = vmax.f32 %v981, %v982
      %v984 = vrot.slane %v983, 2
      %v985 = vmax.f32 %v983, %v984
      %v986 = vrot.slane %v985, 1
      %v987 = vmax.f32 %v985, %v986
      %v988 = vmax.f32 %v957, %v958
      %v989 = vrot.slane %v988, 4
      %v990 = vmax.f32 %v988, %v989
      %v991 = vrot.slane %v990, 2
      %v992 = vmax.f32 %v990, %v991
      %v993 = vrot.slane %v992, 1
      %v994 = vmax.f32 %v992, %v993
      %v995 = vmax.f32 %v959, %v960
      %v996 = vrot.slane %v995, 4
      %v997 = vmax.f32 %v995, %v996
      %v998 = vrot.slane %v997, 2
      %v999 = vmax.f32 %v997, %v998
      %v1000 = vrot.slane %v999, 1
      %v1001 = vmax.f32 %v999, %v1000
      %v1002 = vmax.f32 %v961, %v962
      %v1003 = vrot.slane %v1002, 4
      %v1004 = vmax.f32 %v1002, %v1003
      %v1005 = vrot.slane %v1004, 2
      %v1006 = vmax.f32 %v1004, %v1005
      %v1007 = vrot.slane %v1006, 1
      %v1008 = vmax.f32 %v1006, %v1007
      %v1009 = vmax.f32 %v963, %v964
      %v1010 = vrot.slane %v1009, 4
      %v1011 = vmax.f32 %v1009, %v1010
      %v1012 = vrot.slane %v1011, 2
      %v1013 = vmax.f32 %v1011, %v1012
      %v1014 = vrot.slane %v1013, 1
      %v1015 = vmax.f32 %v1013, %v1014
      %v1016 = vmax.f32 %v965, %v966
      %v1017 = vrot.slane %v1016, 4
      %v1018 = vmax.f32 %v1016, %v1017
      %v1019 = vrot.slane %v1018, 2
      %v1020 = vmax.f32 %v1018, %v1019
      %v1021 = vrot.slane %v1020, 1
      %v1022 = vmax.f32 %v1020, %v1021
      %vm1031 = vcmask 1041409
      %v1032 = vsel %vm1031, %v980, %v973
      %vm1033 = vcmask 1042434
      %v1034 = vsel %vm1033, %v987, %v1032
      %vm1035 = vcmask 1043459
      %v1036 = vsel %vm1035, %v994, %v1034
      %vm1037 = vcmask 1044484
      %v1038 = vsel %vm1037, %v1001, %v1036
      %vm1039 = vcmask 1045509
      %v1040 = vsel %vm1039, %v1008, %v1038
      %vm1041 = vcmask 1046534
      %v1042 = vsel %vm1041, %v1015, %v1040
      %vm1043 = vcmask 1047559
      %v1044 = vsel %vm1043, %v1022, %v1042
      %1046 = vst [vmem:[%s192] sm:$0xff] %v1044
      %p1047 = scmp.lt.s32.totalorder %s15, 1
      %s1048 = scalar_select %p1047, %s15, 1
      %s1049 = smul.addr %s1048, 8
      %s1050 = scalar_lea.vmem %s4, %s1049
      // Predicated region
      $region37: #{character_embedding_forward.1} parent=35 // pred_check
        %p1051 = pneg %p122
      $region38: #{character_embedding_forward.1} parent=35 // pred_check_branch
        %1053 = sbr.rel (%p1051) target = $region40
      $region39: #{character_embedding_forward.1} parent=35 // pred_region
        _
      $region40: #{character_embedding_forward.1} parent=35 // pred_fallthru
        _
    $region36: #{character_embedding_forward.1} parent=5 // pred_fallthru
      _
    %p1054 = scmp.le.s32.totalorder 2, %s10
    // Predicated region
    $region41: #{character_embedding_forward.1} parent=5 // pred_check
      %p1055 = pneg %p1054
    $region42: #{character_embedding_forward.1} parent=5 // pred_check_branch
      %1057 = sbr.rel (%p1055) target = $region44
    $region43: #{character_embedding_forward.1} parent=5 // pred_region
      %s1058 = ssub.s32 %s10, 2
      // Predicated region
      $region45: #{character_embedding_forward.1} parent=43 // pred_check
        %p1059 = pneg %p128
      $region46: #{character_embedding_forward.1} parent=43 // pred_check_branch
        %1061 = sbr.rel (%p1059) target = $region48
      $region47: #{character_embedding_forward.1} parent=43 // pred_region
        %p1062 = scmp.lt.s32.totalorder %s16, 1
        %s1063 = scalar_select %p1062, %s16, 1
        %s1064 = smul.addr %s1063, 8
        %s1065 = scalar_lea.vmem %s4, %s1064
      $region48: #{character_embedding_forward.1} parent=43 // pred_fallthru
        _
    $region44: #{character_embedding_forward.1} parent=5 // pred_fallthru
      _
  $region6: #{character_embedding_forward.1} parent=0 // loop_footer
    %s14 = sadd.s32 1, %s10
  $region7: #{character_embedding_forward.1} parent=0 // loop_footer_branch
    %9 = sbr.rel target = $region3
  $region8: #{character_embedding_forward.1} parent=0 // loop_exit
    _

</llo_original>
